<compile_context>
chip_gen: v7x
topology: tpu7x:2x2x1
jax: 0.10.0
libtpu: 0.0.40
codegen_flags: <defaults>
</compile_context>

<pallas_src>
import functools
import math

import numpy as np
import jax
import jax.numpy as jnp
from jax.experimental import pallas as pl
from jax.experimental.pallas import tpu as pltpu

# ----------------------------- module config (from __init__) -----------------
NUM_TIMESTEPS = 1000
SAMPLE_STEP = 1          # sample_step
SCALE = 2.0              # snr_scale
DIFF_NUM = 3             # diff_feature_num
REC_EPOCHS = 0           # rec_epochs  (first_rec_kd)
MVKD_WEIGHT = 1.0
REC_WEIGHT = 1.0
FEAT_WEIGHT = 1.0
D_MODEL = 256            # FeatRec d_model

LANE = 128
VMEM_LIMIT = 32 * 1024 * 1024     # explicit budget: safe on v5e/v6e (128 MiB) and v7x (64 MiB)
MS_SMEM = pltpu.MemorySpace.SMEM


# ----------------------------- small helpers ---------------------------------
def _round_up(x, m):
    return (x + m - 1) // m * m


def _choose_tile(m):
    # row tile: multiple of 8 sublanes, capped so VMEM stays tiny even double-buffered
    return min(256, _round_up(max(m, 1), 8))


def _pad_last(x, target):
    pad = target - x.shape[-1]
    if pad == 0:
        return x
    cfg = [(0, 0)] * (x.ndim - 1) + [(0, pad)]
    return jnp.pad(x, cfg)


def _pad_rows(x2d, rows):
    if x2d.shape[0] == rows:
        return x2d
    return jnp.pad(x2d, ((0, rows - x2d.shape[0]), (0, 0)))


def _mask_lanes(x, d_valid):
    # zero out padding lanes (static branch: d_valid is a python int)
    if d_valid >= x.shape[-1]:
        return x
    lane = jax.lax.broadcasted_iota(jnp.int32, x.shape, x.ndim - 1)
    return jnp.where(lane < d_valid, x, 0.0)


# ----------------------------- fused FeatRec kernels --------------------------
def _featrec_mlp(x, temb_ref, wi, bi, w1, b1, w2, b2, wo, bo):
    """proj_in -> +temb -> ffn1+GELU -> ffn2 -> proj_out, all VMEM-resident.
    Weights are bf16, accumulation f32 on the MXU, GELU kept in f32 (EUP)."""
    bf = jnp.bfloat16
    h = jnp.dot(x.astype(bf), wi[...], preferred_element_type=jnp.float32) + bi[...]
    h = h + temb_ref[...]                                            # (1, d_model) broadcast
    h = jnp.dot(h.astype(bf), w1[...], preferred_element_type=jnp.float32) + b1[...]
    h = jax.nn.gelu(h)                                               # tanh-approx, f32
    h = jnp.dot(h.astype(bf), w2[...], preferred_element_type=jnp.float32) + b2[...]
    out = jnp.dot(h.astype(bf), wo[...], preferred_element_type=jnp.float32) + bo[...]
    return out


def _featrec_qsample_kernel(coef_ref, x_ref, n_ref, temb_ref,
                            wi, bi, w1, b1, w2, b2, wo, bo, o_ref,
                            *, d_valid, scale):
    # fused prepare_diffusion_concat prologue: x_start scaling, q_sample mix,
    # clamp, rescale back to [0, 1] -- then the FeatRec MLP.
    sa = coef_ref[0]                        # sqrt_alphas_cumprod[t]
    soma = coef_ref[1]                      # sqrt_one_minus_alphas_cumprod[t]
    x_start = (x_ref[...] * 2.0 - 1.0) * scale
    xq = jnp.clip(sa * x_start + soma * n_ref[...], -scale, scale)
    x = (xq / scale + 1.0) / 2.0
    out = _featrec_mlp(x, temb_ref, wi, bi, w1, b1, w2, b2, wo, bo)
    o_ref[...] = _mask_lanes(out, d_valid).astype(o_ref.dtype)


def _featrec_pred_kernel(coef_ref, f_ref, temb_ref,
                         wi, bi, w1, b1, w2, b2, wo, bo, of_ref, on_ref,
                         *, d_valid, scale):
    # fused model_predictions: clip/rescale prologue, FeatRec MLP, rescale/clip
    # epilogue and predict_noise_from_start -- two lane-dense outputs.
    f = f_ref[...]
    x = jnp.clip(f, -scale, scale)
    x = (x / scale + 1.0) / 2.0
    out = _featrec_mlp(x, temb_ref, wi, bi, w1, b1, w2, b2, wo, bo)
    pred_f = jnp.clip((out * 2.0 - 1.0) * scale, -scale, scale)
    pred_f = _mask_lanes(pred_f, d_valid)
    sr = coef_ref[0]                        # sqrt_recip_alphas_cumprod[t]
    srm1 = coef_ref[1]                      # sqrt_recipm1_alphas_cumprod[t]
    pred_noise = _mask_lanes((sr * f - pred_f) / srm1, d_valid)
    of_ref[...] = pred_f.astype(of_ref.dtype)
    on_ref[...] = pred_noise.astype(on_ref.dtype)


def _align_kernel(x_ref, w_ref, b_ref, o_ref):
    acc = jnp.dot(x_ref[...].astype(jnp.bfloat16), w_ref[...],
                  preferred_element_type=jnp.float32)
    o_ref[...] = (acc + b_ref[...]).astype(o_ref.dtype)


def _featrec_weight_specs(dtp):
    c = lambda i: (0, 0)                                # grid-invariant -> VMEM resident
    return [
        pl.BlockSpec((dtp, D_MODEL), c),                # proj_in_w
        pl.BlockSpec((1, D_MODEL), c),                  # proj_in_b
        pl.BlockSpec((D_MODEL, D_MODEL), c),            # ffn1_w
        pl.BlockSpec((1, D_MODEL), c),                  # ffn1_b
        pl.BlockSpec((D_MODEL, D_MODEL), c),            # ffn2_w
        pl.BlockSpec((1, D_MODEL), c),                  # ffn2_b
        pl.BlockSpec((D_MODEL, dtp), c),                # proj_out_w
        pl.BlockSpec((1, dtp), c),                      # proj_out_b
    ]


def _featrec_weights(pp):
    return (pp["proj_in_w"], pp["proj_in_b"], pp["ffn1_w"], pp["ffn1_b"],
            pp["ffn2_w"], pp["ffn2_b"], pp["proj_out_w"], pp["proj_out_b"])


def featrec_qsample(pp, x2d, noise2d, coef, temb, d_valid):
    """q_sample(feature, t, noise) -> FeatRec, all in one pallas_call."""
    M, Dp = x2d.shape
    tile = _choose_tile(M)
    Mp = _round_up(M, tile)
    x = _pad_rows(x2d, Mp)
    n = _pad_rows(noise2d, Mp)
    kernel = functools.partial(_featrec_qsample_kernel, d_valid=d_valid, scale=SCALE)
    out = pl.pallas_call(
        kernel,
        out_shape=jax.ShapeDtypeStruct((Mp, Dp), jnp.float32),
        grid=(Mp // tile,),
        in_specs=[pl.BlockSpec(memory_space=MS_SMEM),                 # (sa, soma) scalars
                  pl.BlockSpec((tile, Dp), lambda i: (i, 0)),         # feature rows
                  pl.BlockSpec((tile, Dp), lambda i: (i, 0)),         # noise rows
                  pl.BlockSpec((1, D_MODEL), lambda i: (0, 0))]       # time embedding
                 + _featrec_weight_specs(Dp),
        out_specs=pl.BlockSpec((tile, Dp), lambda i: (i, 0)),
        compiler_params=pltpu.CompilerParams(
            dimension_semantics=("parallel",),
            vmem_limit_bytes=VMEM_LIMIT),
    )(coef, x, n, temb, *_featrec_weights(pp))
    return out[:M]


def featrec_pred(pp, f2d, coef, temb, d_valid):
    """model_predictions(f, t) -> (pred_f, pred_noise), one pallas_call."""
    M, Dp = f2d.shape
    tile = _choose_tile(M)
    Mp = _round_up(M, tile)
    f = _pad_rows(f2d, Mp)
    kernel = functools.partial(_featrec_pred_kernel, d_valid=d_valid, scale=SCALE)
    pred_f, pred_noise = pl.pallas_call(
        kernel,
        out_shape=(jax.ShapeDtypeStruct((Mp, Dp), jnp.float32),
                   jax.ShapeDtypeStruct((Mp, Dp), jnp.float32)),
        grid=(Mp // tile,),
        in_specs=[pl.BlockSpec(memory_space=MS_SMEM),                 # (sr, srm1) scalars
                  pl.BlockSpec((tile, Dp), lambda i: (i, 0)),         # f rows
                  pl.BlockSpec((1, D_MODEL), lambda i: (0, 0))]       # time embedding
                 + _featrec_weight_specs(Dp),
        out_specs=(pl.BlockSpec((tile, Dp), lambda i: (i, 0)),
                   pl.BlockSpec((tile, Dp), lambda i: (i, 0))),
        compiler_params=pltpu.CompilerParams(
            dimension_semantics=("parallel",),
            vmem_limit_bytes=VMEM_LIMIT),
    )(coef, f, temb, *_featrec_weights(pp))
    return pred_f[:M], pred_noise[:M]


def align_linear(pp, x2d):
    """nn.Linear(student_dims, teacher_dims) on lane-padded slabs."""
    M, Dsp = x2d.shape
    Dtp = pp["align_w"].shape[1]
    tile = _choose_tile(M)
    Mp = _round_up(M, tile)
    x = _pad_rows(x2d, Mp)
    out = pl.pallas_call(
        _align_kernel,
        out_shape=jax.ShapeDtypeStruct((Mp, Dtp), jnp.float32),
        grid=(Mp // tile,),
        in_specs=[pl.BlockSpec((tile, Dsp), lambda i: (i, 0)),
                  pl.BlockSpec((Dsp, Dtp), lambda i: (0, 0)),
                  pl.BlockSpec((1, Dtp), lambda i: (0, 0))],
        out_specs=pl.BlockSpec((tile, Dtp), lambda i: (i, 0)),
        compiler_params=pltpu.CompilerParams(
            dimension_semantics=("parallel",),
            vmem_limit_bytes=VMEM_LIMIT),
    )(x, pp["align_w"], pp["align_b"])
    return out[:M]


# ----------------------------- SSE (MSELoss(reduction='sum')) -----------------
def _sse_kernel(a_ref, b_ref, o_ref, acc_ref):
    @pl.when(pl.program_id(0) == 0)
    def _():
        acc_ref[...] = jnp.zeros_like(acc_ref)

    d = a_ref[...] - b_ref[...]
    acc_ref[...] += jnp.sum(d * d, axis=0, keepdims=True)      # per-lane partial sums

    @pl.when(pl.program_id(0) == pl.num_programs(0) - 1)
    def _():
        o_ref[0, 0] = jnp.sum(acc_ref[...])


def sse(a, b):
    """nn.MSELoss(reduction='sum')(a, b) -- inputs are lane-padded with zeros,
    so padding contributes exactly 0 to the sum."""
    a2 = a.reshape(-1, a.shape[-1]).astype(jnp.float32)
    b2 = b.reshape(-1, b.shape[-1]).astype(jnp.float32)
    M, D = a2.shape
    tile = min(512, _round_up(M, 8))
    Mp = _round_up(M, tile)
    a2 = _pad_rows(a2, Mp)
    b2 = _pad_rows(b2, Mp)
    out = pl.pallas_call(
        _sse_kernel,
        out_shape=jax.ShapeDtypeStruct((1, 1), jnp.float32),
        grid=(Mp // tile,),
        in_specs=[pl.BlockSpec((tile, D), lambda i: (i, 0)),
                  pl.BlockSpec((tile, D), lambda i: (i, 0))],
        out_specs=pl.BlockSpec(memory_space=MS_SMEM),
        scratch_shapes=[pltpu.VMEM((1, D), jnp.float32)],
        compiler_params=pltpu.CompilerParams(
            dimension_semantics=("arbitrary",),
            vmem_limit_bytes=VMEM_LIMIT),
    )(a2, b2)
    return out[0, 0]


# ----------------------------- diffusion buffers ------------------------------
def cosine_beta_schedule_np(timesteps, s=0.008):
    steps = timesteps + 1
    x = np.linspace(0, timesteps, steps, dtype=np.float64)
    alphas_cumprod = np.cos((x / timesteps + s) / (1 + s) * math.pi * 0.5) ** 2
    alphas_cumprod = alphas_cumprod / alphas_cumprod[0]
    betas = 1 - alphas_cumprod[1:] / alphas_cumprod[:-1]
    return np.clip(betas, 0, 0.999)


def make_diffusion_buffers():
    betas = cosine_beta_schedule_np(NUM_TIMESTEPS)
    alphas = 1.0 - betas
    alphas_cumprod = np.cumprod(alphas, axis=0)
    bufs = {
        "betas": betas,
        "alphas_cumprod": alphas_cumprod,
        "sqrt_alphas_cumprod": np.sqrt(alphas_cumprod),
        "sqrt_one_minus_alphas_cumprod": np.sqrt(1.0 - alphas_cumprod),
        "sqrt_recip_alphas_cumprod": np.sqrt(1.0 / alphas_cumprod),
        "sqrt_recipm1_alphas_cumprod": np.sqrt(1.0 / alphas_cumprod - 1.0),
    }
    return {k: jnp.asarray(v, dtype=jnp.float32) for k, v in bufs.items()}


# ----------------------------- parameters -------------------------------------
def init_params(key, student_dims, teacher_dims):
    def w(k, shape):
        return 0.02 * jax.random.normal(k, shape, jnp.float32)

    ks = jax.random.split(key, 6)
    return {
        # align : nn.Linear(student_dims, teacher_dims)
        "align_w": w(ks[0], (student_dims, teacher_dims)),
        "align_b": jnp.zeros((teacher_dims,), jnp.float32),
        # FeatRec stand-in (see TODO in feat_rec section)
        "proj_in_w": w(ks[1], (teacher_dims, D_MODEL)),
        "proj_in_b": jnp.zeros((D_MODEL,), jnp.float32),
        "time_w": w(ks[2], (D_MODEL, D_MODEL)),
        "time_b": jnp.zeros((D_MODEL,), jnp.float32),
        "ffn1_w": w(ks[3], (D_MODEL, D_MODEL)),
        "ffn1_b": jnp.zeros((D_MODEL,), jnp.float32),
        "ffn2_w": w(ks[4], (D_MODEL, D_MODEL)),
        "ffn2_b": jnp.zeros((D_MODEL,), jnp.float32),
        "proj_out_w": w(ks[5], (D_MODEL, teacher_dims)),
        "proj_out_b": jnp.zeros((teacher_dims,), jnp.float32),
    }


def pad_and_cast_params(params, student_dims, teacher_dims):
    """Zero-pad channel axes to 128 lanes (lane-dense loads/stores) and cast matmul
    weights to bf16 (f32 accumulation happens on the MXU). Biases stay f32."""
    dsp = _round_up(student_dims, LANE)
    dtp = _round_up(teacher_dims, LANE)

    def pad_w(w2d, r, c):
        return jnp.pad(w2d, ((0, r - w2d.shape[0]), (0, c - w2d.shape[1]))).astype(jnp.bfloat16)

    def pad_b(b1d, c):
        return jnp.pad(b1d, (0, c - b1d.shape[0])).reshape(1, c).astype(jnp.float32)

    return {
        "align_w": pad_w(params["align_w"], dsp, dtp),
        "align_b": pad_b(params["align_b"], dtp),
        "proj_in_w": pad_w(params["proj_in_w"], dtp, D_MODEL),
        "proj_in_b": pad_b(params["proj_in_b"], D_MODEL),
        "ffn1_w": params["ffn1_w"].astype(jnp.bfloat16),
        "ffn1_b": params["ffn1_b"].reshape(1, D_MODEL).astype(jnp.float32),
        "ffn2_w": params["ffn2_w"].astype(jnp.bfloat16),
        "ffn2_b": params["ffn2_b"].reshape(1, D_MODEL).astype(jnp.float32),
        "proj_out_w": pad_w(params["proj_out_w"], D_MODEL, dtp),
        "proj_out_b": pad_b(params["proj_out_b"], dtp),
        # time-embedding projection stays f32 / plain-JAX (1-row matmul)
        "time_w": params["time_w"].astype(jnp.float32),
        "time_b": params["time_b"].astype(jnp.float32),
        "d_s_pad": dsp,
        "d_t_pad": dtp,
    }


# ----------------------------- FeatRec (rec_module) ---------------------------
# TODO(synk): the original FeatRec (transformer, nhead=8, dropout=0.1) is not given
# in the reference source; this is a time-conditioned MLP stand-in with the same
# in/out dims (teacher_dims -> d_model=256 -> teacher_dims), fused into one kernel.
def time_embedding(pp, t):
    # sinusoidal embedding + tiny (len(t),256)@(256,256) projection: plain JAX on
    # purpose -- a pallas_call dispatch would cost more than this compute.
    half = D_MODEL // 2
    freqs = jnp.exp(-math.log(10000.0) * jnp.arange(half, dtype=jnp.float32) / half)
    args = t.astype(jnp.float32)[:, None] * freqs[None, :]
    emb = jnp.concatenate([jnp.sin(args), jnp.cos(args)], axis=-1)       # (len(t), 256)
    emb = emb @ pp["time_w"] + pp["time_b"]
    return emb[:1]          # every caller uses a single (broadcast) timestep value


# ----------------------------- diffusion sampling ------------------------------
def ddim_sample_batched(pp, buffers, feature_pad, key, num_samples, d_valid):
    """All `num_samples` independent ddim_sample() draws run as ONE batched
    FeatRec/model_predictions chain over (num_samples*B*N) rows."""
    B, N, Dp = feature_pad.shape
    times = np.linspace(-1.0, NUM_TIMESTEPS - 1, SAMPLE_STEP + 1)
    times = list(reversed(times.astype(np.int64).tolist()))
    time_pairs = list(zip(times[:-1], times[1:]))

    key, kf = jax.random.split(key)
    f = jax.random.normal(kf, (num_samples, B, N, d_valid), jnp.float32)
    f = _pad_last(f, Dp)                                 # pad lanes stay exactly zero

    for time, time_next in time_pairs:
        coef = jnp.stack([buffers["sqrt_recip_alphas_cumprod"][time],
                          buffers["sqrt_recipm1_alphas_cumprod"][time]]).astype(jnp.float32)
        temb = time_embedding(pp, jnp.array([time], jnp.int32))
        pred_f2, pred_noise2 = featrec_pred(
            pp, f.reshape(num_samples * B * N, Dp), coef, temb, d_valid)
        x_start = pred_f2.reshape(num_samples, B, N, Dp)
        if time_next < 0:
            f = x_start
            continue
        pred_noise = pred_noise2.reshape(num_samples, B, N, Dp)
        alpha = buffers["alphas_cumprod"][time]
        alpha_next = buffers["alphas_cumprod"][time_next]
        sigma = jnp.sqrt((1 - alpha / alpha_next) * (1 - alpha_next) / (1 - alpha))
        c = jnp.sqrt(1 - alpha_next - sigma ** 2)
        key, kn = jax.random.split(key)
        noise = jax.random.normal(kn, (num_samples, B, N, d_valid), jnp.float32)
        noise = _pad_last(noise, Dp)
        f = x_start * jnp.sqrt(alpha_next) + c * pred_noise + sigma * noise
    return f


# ----------------------------- MVKDLoss.forward --------------------------------
def mvkd_loss_forward(pp, buffers, preds_S, preds_T, cur_epoch, key):
    low_s, high_s = preds_S
    low_t, high_t = preds_T
    B, N, d_t = high_t.shape
    d_s = high_s.shape[-1]
    dtp = pp["d_t_pad"]
    dsp = pp["d_s_pad"]

    high_t_pad = _pad_last(high_t.astype(jnp.float32), dtp)       # (B,N,128), pad lanes 0
    high_s_pad = _pad_last(high_s.astype(jnp.float32), dsp)

    _k_unused, k2, k3 = jax.random.split(key, 3)

    # NOTE: the torch forward calls prepare_diffusion_concat + rec_module here and
    # discards the result; it does not contribute to the returned loss, so the dead
    # work is dropped (XLA would DCE the side-effect-free pallas_call anyway).

    # 'ViTKD: Generation' -- align student feature to teacher dims.
    if d_s != d_t:
        x = align_linear(pp, high_s_pad.reshape(B * N, dsp)).reshape(B, N, dtp)
    else:
        x = _pad_last(high_s.astype(jnp.float32), dtp)

    if cur_epoch > REC_EPOCHS:
        # multi-view diffusion branch: DIFF_NUM samples batched into one chain
        diffusion = ddim_sample_batched(pp, buffers, high_t_pad, k2, DIFF_NUM, d_t)
        diffusion_x = jnp.mean(diffusion, axis=0)                 # == (sum of views)/diff_num
        mvkd_loss = sse(x, diffusion_x) / B * MVKD_WEIGHT
    else:
        # reconstruction + fitnet branch
        kt, kn = jax.random.split(k3)
        t = jax.random.randint(kt, (1,), 0, NUM_TIMESTEPS)
        noise = jax.random.normal(kn, (B, N, d_t), jnp.float32)
        noise_pad = _pad_last(noise, dtp)
        coef = jnp.stack([buffers["sqrt_alphas_cumprod"][t[0]],
                          buffers["sqrt_one_minus_alphas_cumprod"][t[0]]]).astype(jnp.float32)
        temb = time_embedding(pp, t)
        rec = featrec_qsample(pp, high_t_pad.reshape(B * N, dtp),
                              noise_pad.reshape(B * N, dtp), coef, temb, d_t)
        rec = rec.reshape(B, N, dtp)
        mvkd_rec = sse(high_t_pad, rec) / B * REC_WEIGHT
        mvkd_fitnet = sse(x, high_t_pad) / B * FEAT_WEIGHT
        mvkd_loss = mvkd_rec + mvkd_fitnet
    return mvkd_loss


# ----------------------------- main --------------------------------------------
if __name__ == "__main__":
    B, N = 2, 8
    student_dims, teacher_dims = 32, 64

    key = jax.random.PRNGKey(0)
    ks = jax.random.split(key, 6)
    low_s = jax.random.normal(ks[0], (B, 2, N, student_dims), jnp.float32)
    high_s = jax.random.normal(ks[1], (B, N, student_dims), jnp.float32)
    low_t = jax.random.normal(ks[2], (B, 2, N, teacher_dims), jnp.float32)
    high_t = jax.random.normal(ks[3], (B, N, teacher_dims), jnp.float32)

    raw_params = init_params(jax.random.PRNGKey(42), student_dims, teacher_dims)
    pp = pad_and_cast_params(raw_params, student_dims, teacher_dims)
    buffers = make_diffusion_buffers()

    # cur_epoch <= rec_epochs -> reconstruction + fitnet branch
    loss_rec = mvkd_loss_forward(pp, buffers, (low_s, high_s), (low_t, high_t),
                                 cur_epoch=0, key=ks[4])
    # cur_epoch > rec_epochs -> multi-view diffusion branch (batched DIFF_NUM ddim samples)
    loss_mvkd = mvkd_loss_forward(pp, buffers, (low_s, high_s), (low_t, high_t),
                                  cur_epoch=1, key=ks[5])

    jax.block_until_ready((loss_rec, loss_mvkd))
    assert jnp.isfinite(loss_rec) and jnp.isfinite(loss_mvkd)
    print("KERNEL_OK")
</pallas_src>

<mosaic_0001>
module attributes {stable_mosaic.version = 11 : i64} {
  func.func @_align_kernel(%arg0: i32, %arg1: memref<16x128xf32, #tpu.memory_space<vmem>>, %arg2: memref<128x128xbf16, #tpu.memory_space<vmem>>, %arg3: memref<1x128xf32, #tpu.memory_space<vmem>>, %arg4: memref<16x128xf32, #tpu.memory_space<vmem>>) attributes {dimension_semantics = [#tpu.dimension_semantics<parallel>], iteration_bounds = array<i64: 1>, scalar_prefetch = 0 : i64, scratch_operands = 0 : i64, tpu.core_type = #tpu.core_type<tc>, window_params = [{transform_indices = @transform_0, window_bounds = array<i64: 16, 128>}, {pipeline_mode = #tpu.pipeline_mode<synchronous>, transform_indices = @transform_1, window_bounds = array<i64: 128, 128>}, {pipeline_mode = #tpu.pipeline_mode<synchronous>, transform_indices = @transform_2, window_bounds = array<i64: 1, 128>}, {transform_indices = @transform_3, window_bounds = array<i64: 16, 128>}]} {
    %c0 = arith.constant 0 : index
    %c0_0 = arith.constant 0 : index
    %0 = vector.load %arg1[%c0, %c0_0] : memref<16x128xf32, #tpu.memory_space<vmem>>, vector<16x128xf32>
    %1 = arith.truncf %0 : vector<16x128xf32> to vector<16x128xbf16>
    %c0_1 = arith.constant 0 : index
    %c0_2 = arith.constant 0 : index
    %2 = vector.load %arg2[%c0_1, %c0_2] : memref<128x128xbf16, #tpu.memory_space<vmem>>, vector<128x128xbf16>
    %cst = arith.constant dense<0.000000e+00> : vector<16x128xf32>
    %3 = tpu.matmul %1, %2, %cst {dimension_numbers = #tpu.dot_dimension_numbers<[1], [0], [0], [1], [0, 0, 1, 1], [], []>} : vector<16x128xbf16>, vector<128x128xbf16>, vector<16x128xf32> -> vector<16x128xf32>
    %c0_3 = arith.constant 0 : index
    %c0_4 = arith.constant 0 : index
    %4 = vector.load %arg3[%c0_3, %c0_4] : memref<1x128xf32, #tpu.memory_space<vmem>>, vector<1x128xf32>
    %5 = vector.broadcast %4 : vector<1x128xf32> to vector<16x128xf32>
    %6 = arith.addf %3, %5 : vector<16x128xf32>
    %c0_5 = arith.constant 0 : index
    %c0_6 = arith.constant 0 : index
    %7 = vector.load %arg4[%c0_5, %c0_6] : memref<16x128xf32, #tpu.memory_space<vmem>>, vector<16x128xf32>
    tpu.vector_store %arg4[%c0_5, %c0_6], %6 {strides = array<i32>} : memref<16x128xf32, #tpu.memory_space<vmem>>, vector<16x128xf32>,
    return
  }
  func.func @transform_0(%arg0: i32) -> (i32, i32) {
    %c0_i32 = arith.constant 0 : i32
    %c0_i32_0 = arith.constant 0 : i32
    return %arg0, %c0_i32 : i32, i32
  }
  func.func @transform_1(%arg0: i32) -> (i32, i32) {
    %c0_i32 = arith.constant 0 : i32
    %c0_i32_0 = arith.constant 0 : i32
    %c0_i32_1 = arith.constant 0 : i32
    return %c0_i32, %c0_i32_0 : i32, i32
  }
  func.func @transform_2(%arg0: i32) -> (i32, i32) {
    %c0_i32 = arith.constant 0 : i32
    %c0_i32_0 = arith.constant 0 : i32
    %c0_i32_1 = arith.constant 0 : i32
    return %c0_i32, %c0_i32_0 : i32, i32
  }
  func.func @transform_3(%arg0: i32) -> (i32, i32) {
    %c0_i32 = arith.constant 0 : i32
    %c0_i32_0 = arith.constant 0 : i32
    return %arg0, %c0_i32 : i32, i32
  }
}

</mosaic_0001>

<llo_original>
// kernel: tpu_custom_call.1
$region0: #{tpu_custom_call.1}
  #allocation0 [shape = 'u32[]', space=smem, size = 0x4, offset = 0x4, fixed_abs, tag = 'smem constant byte address 0x4 - core index']
  #allocation1 [shape = 'u32[144,128]{1,0:T(1,128)}', space=vmem, size = 0x12000, scoped, tag = 'internal scratch']
  %s0 = inlined_call_operand.hbm [shape: f32[16,128], index: 0, kind: input, shape index: {}]
  %s1 = inlined_call_operand.hbm [shape: bf16[128,128], index: 1, kind: input, shape index: {}]
  %s2 = inlined_call_operand.vmem [shape: f32[1,128], index: 2, kind: input, shape index: {}]
  %s3 = inlined_call_operand.hbm [shape: f32[16,128], index: 3, kind: output, shape index: {}]
  %s4 = sld [smem:[#allocation0]]
  $region30: #{tpu_custom_call.1} parent=0
    _
  %s6 = ssub.s32 1, %s4
  %s7 = scalar_select 0, %s6, %s4
  $region1: #{tpu_custom_call.1} parent=0
    #allocation2 [shape = 'u8[8192]{0}', space=vmem, size = 0x2000, scoped, tag = 'input window, operand 0, single buffered']
    #allocation3 [shape = 's32[1]{0}', space=sflag, size = 0x4, scoped, tag = 'scoped memory for tpu_custom_call.1']
    #allocation4 [shape = 's32[1]{0}', space=sflag, size = 0x4, scoped, tag = 'scoped memory for tpu_custom_call.1']
    #allocation5 [shape = 'u8[32768]{0}', space=vmem, size = 0x8000, scoped, tag = 'input window, operand 1, single buffered']
    #allocation6 [shape = 's32[1]{0}', space=sflag, size = 0x4, scoped, tag = 'scoped memory for tpu_custom_call.1']
    #allocation7 [shape = 'u8[8192]{0}', space=vmem, size = 0x2000, scoped, tag = 'output window, operand 0, single buffered']
    %8 = vsyncpa [#allocation3], 0
    %9 = vsyncpa [#allocation6], 0
    %10 = vsyncpa [#allocation4], 0
    // Predicated region
    $region2: #{tpu_custom_call.1} parent=1 // pred_check
      _
    $region3: #{tpu_custom_call.1} parent=1 // pred_check_branch
      %12 = sbr.rel (0) target = $region5
    $region4: #{tpu_custom_call.1} parent=1 // pred_region
      %s14 = ssub.s32 256, 256
      %15 = vsyncadd [#allocation3], %s14
      %s16 = sshll.u32 [#allocation2], 4
      %s17 = int_to_ptr.vmem [resolvable:$true] %s16
      %22 = dma.hbm_to_vmem [thread:$0]  %s0, 256, %s17, [#allocation3], 128, 128, 8
    $region5: #{tpu_custom_call.1} parent=1 // pred_fallthru
      _
    // Predicated region
    $region6: #{tpu_custom_call.1} parent=1 // pred_check
      _
    $region7: #{tpu_custom_call.1} parent=1 // pred_check_branch
      %24 = sbr.rel (0) target = $region9
    $region8: #{tpu_custom_call.1} parent=1 // pred_region
      %s26 = ssub.s32 1024, 1024
      %27 = vsyncadd [#allocation6], %s26
      %s28 = sshll.u32 [#allocation5], 4
      %s29 = int_to_ptr.vmem [resolvable:$true] %s28
      %34 = dma.hbm_to_vmem [thread:$0]  %s1, 1024, %s29, [#allocation6], 64, 64, 4
    $region9: #{tpu_custom_call.1} parent=1 // pred_fallthru
      _
    // Predicated region
    $region10: #{tpu_custom_call.1} parent=1 // pred_check
      _
    $region11: #{tpu_custom_call.1} parent=1 // pred_check_branch
      %36 = sbr.rel (0) target = $region13
    $region12: #{tpu_custom_call.1} parent=1 // pred_region
      _
    $region13: #{tpu_custom_call.1} parent=1 // pred_fallthru
      _
    // Predicated region
    $region14: #{tpu_custom_call.1} parent=1 // pred_check
      _
    $region15: #{tpu_custom_call.1} parent=1 // pred_check_branch
      %38 = sbr.rel (0) target = $region17
    $region16: #{tpu_custom_call.1} parent=1 // pred_region
      %39 = dma.done [#allocation3], 256
    $region17: #{tpu_custom_call.1} parent=1 // pred_fallthru
      _
    // Predicated region
    $region18: #{tpu_custom_call.1} parent=1 // pred_check
      _
    $region19: #{tpu_custom_call.1} parent=1 // pred_check_branch
      %41 = sbr.rel (0) target = $region21
    $region20: #{tpu_custom_call.1} parent=1 // pred_region
      %42 = dma.done [#allocation6], 1024
    $region21: #{tpu_custom_call.1} parent=1 // pred_fallthru
      _
    %v44 = vld [vmem:[#allocation2] sm:$0xff]
    %v45 = vld [vmem:[#allocation2 + $0x8] sm:$0xff]
    %v46 = vpack.c.bf16 %v45, %v44
    %v47 = vld [vmem:[#allocation5] sm:$0xf]
    %v48 = vld [vmem:[#allocation5 + $0x4] sm:$0xf]
    %v49 = vld [vmem:[#allocation5 + $0x8] sm:$0xf]
    %v50 = vld [vmem:[#allocation5 + $0xc] sm:$0xf]
    %v51 = vld [vmem:[#allocation5 + $0x10] sm:$0xf]
    %v52 = vld [vmem:[#allocation5 + $0x14] sm:$0xf]
    %v53 = vld [vmem:[#allocation5 + $0x18] sm:$0xf]
    %v54 = vld [vmem:[#allocation5 + $0x1c] sm:$0xf]
    %v55 = vld [vmem:[#allocation5 + $0x20] sm:$0xf]
    %v56 = vld [vmem:[#allocation5 + $0x24] sm:$0xf]
    %v57 = vld [vmem:[#allocation5 + $0x28] sm:$0xf]
    %v58 = vld [vmem:[#allocation5 + $0x2c] sm:$0xf]
    %v59 = vld [vmem:[#allocation5 + $0x30] sm:$0xf]
    %v60 = vld [vmem:[#allocation5 + $0x34] sm:$0xf]
    %v61 = vld [vmem:[#allocation5 + $0x38] sm:$0xf]
    %v62 = vld [vmem:[#allocation5 + $0x3c] sm:$0xf]
    %v63 = vld [vmem:[%s2] sm:$0x1]
    %v65 = vlaneseq
    %v66 = vshrl.u32 %v65, 7
    %v67 = vsub.s32 0, %v66
    %v68 = vrot.slane %v63, %v67
    %v86 = vunpack.c.l.b16 %v47
    %v87 = vunpack.c.l.b16 %v48
    %v88 = vunpack.c.l.b16 %v49
    %v89 = vunpack.c.l.b16 %v50
    %v90 = vunpack.c.l.b16 %v51
    %v91 = vunpack.c.l.b16 %v52
    %v92 = vunpack.c.l.b16 %v53
    %v93 = vunpack.c.l.b16 %v54
    %v94 = vunpack.c.l.b16 %v55
    %v95 = vunpack.c.l.b16 %v56
    %v96 = vunpack.c.l.b16 %v57
    %v97 = vunpack.c.l.b16 %v58
    %v98 = vunpack.c.l.b16 %v59
    %v99 = vunpack.c.l.b16 %v60
    %v100 = vunpack.c.l.b16 %v61
    %v101 = vunpack.c.l.b16 %v62
    %v102 = vpack.c.b16 %v87, %v86
    %v103 = vpack.c.b16 %v89, %v88
    %v104 = vpack.c.b16 %v91, %v90
    %v105 = vpack.c.b16 %v93, %v92
    %v106 = vpack.c.b16 %v95, %v94
    %v107 = vpack.c.b16 %v97, %v96
    %v108 = vpack.c.b16 %v99, %v98
    %v109 = vpack.c.b16 %v101, %v100
    %118 = vmatprep.subr.bf16.mxu0 0
    %119 = vmatpush1.bf16.msra.mxu0 %v102
    %120 = vmatprep.subr.bf16.mxu0 0
    %121 = vmatpush1.bf16.msra.mxu0 %v103
    %122 = vmatprep.subr.bf16.mxu0 0
    %123 = vmatpush1.bf16.msra.mxu0 %v104
    %124 = vmatprep.subr.bf16.mxu0 0
    %125 = vmatpush1.bf16.msra.mxu0 %v105
    %126 = vmatprep.subr.bf16.mxu0 0
    %127 = vmatpush1.bf16.msra.mxu0 %v106
    %128 = vmatprep.subr.bf16.mxu0 0
    %129 = vmatpush1.bf16.msra.mxu0 %v107
    %130 = vmatprep.subr.bf16.mxu0 0
    %131 = vmatpush1.bf16.msra.mxu0 %v108
    %132 = vmatprep.subr.bf16.mxu0 0
    %133 = vmatpush1.bf16.msra.mxu0 %v109
    %134 = vmatprep.subr.bf16.mxu0 0
    %135 = vmatpush1.bf16.msra.mxu0 0
    %136 = vmatprep.subr.bf16.mxu0 0
    %137 = vmatpush1.bf16.msra.mxu0 0
    %138 = vmatprep.subr.bf16.mxu0 0
    %139 = vmatpush1.bf16.msra.mxu0 0
    %140 = vmatprep.subr.bf16.mxu0 0
    %141 = vmatpush1.bf16.msra.mxu0 0
    %142 = vmatprep.subr.bf16.mxu0 0
    %143 = vmatpush1.bf16.msra.mxu0 0
    %144 = vmatprep.subr.bf16.mxu0 0
    %145 = vmatpush1.bf16.msra.mxu0 0
    %146 = vmatprep.subr.bf16.mxu0 0
    %147 = vmatpush1.bf16.msra.mxu0 0
    %148 = vmatprep.subr.bf16.mxu0 0
    %149 = vmatpush1.bf16.msra.mxu0 0
    %150 = vmatprep.mubr.bf16.mxu0 0
    %151 = vmatmul.mubr.bf16.gmra.mrb[0].mxu0 %v46
    %v152 = vpop.f32.mrb[0].mxu0
    %v153 = vadd.f32 %v68, %v152
    %v154 = vpop.f32.mrb[0].mxu0
    %v155 = vpop.f32.mrb[0].mxu0
    %v156 = vadd.f32 %v68, %v155
    %v157 = vpop.f32.mrb[0].mxu0
    %158 = vdwg.mxu0
    %159 = vst [vmem:[#allocation7] sm:$0xff] %v153
    %160 = vst [vmem:[#allocation7 + $0x8] sm:$0xff] %v156
    // Predicated region
    $region22: #{tpu_custom_call.1} parent=1 // pred_check
      _
    $region23: #{tpu_custom_call.1} parent=1 // pred_check_branch
      %162 = sbr.rel (0) target = $region25
    $region24: #{tpu_custom_call.1} parent=1 // pred_region
      %s164 = ssub.s32 256, 256
      %165 = vsyncadd [#allocation4], %s164
      %s166 = sshll.u32 [#allocation7], 4
      %s167 = int_to_ptr.vmem [resolvable:$true] %s166
      %172 = dma.vmem_to_hbm [thread:$0]  %s167, 256, %s3, [#allocation4], 128, 128, 8
    $region25: #{tpu_custom_call.1} parent=1 // pred_fallthru
      _
    // Predicated region
    $region26: #{tpu_custom_call.1} parent=1 // pred_check
      _
    $region27: #{tpu_custom_call.1} parent=1 // pred_check_branch
      %174 = sbr.rel (0) target = $region29
    $region28: #{tpu_custom_call.1} parent=1 // pred_region
      %175 = dma.done [#allocation4], 256
    $region29: #{tpu_custom_call.1} parent=1 // pred_fallthru
      _
    %176 = vsyncpa [#allocation3], 1
    %177 = vsyncpa [#allocation6], 1
    %178 = vsyncpa [#allocation4], 1

</llo_original>
